<compile_context>
chip_gen: v5e
topology: v5e:2x2
jax: 0.10.0
libtpu: 0.0.40
codegen_flags: <defaults>
</compile_context>

<pallas_src>
import functools

import jax
import jax.numpy as jnp
from jax import lax
from jax.experimental import pallas as pl
from jax.experimental.pallas import tpu as pltpu

_NEG_LOG_EPS = 18.420680743952367    # -log(1e-8): the clamp_min(1e-8) cap
_NEG_BIG = -1e30                     # running-max init


def _round_up(x, m):
    return (x + m - 1) // m * m


def _cm_lse_kernel(xn_ref, f_ref, lse_ref, m_ref, l_ref, *, n_pad_cols):
    # xn_ref : (bt, D)  bf16  normalized & 1/temp-scaled inputs (resident per B tile)
    # f_ref  : (tn, D)  bf16  feature-bank tile (streamed along k)
    # lse_ref: (bt, 1)  f32   row logsumexp, written only on the last k step
    # scratch: m (bt,1) f32 running max; l (bt,1) f32 running (rescaled) sum-exp
    k = pl.program_id(1)
    nk = pl.num_programs(1)

    @pl.when(k == 0)
    def _init():
        m_ref[...] = jnp.full_like(m_ref, _NEG_BIG)
        l_ref[...] = jnp.zeros_like(l_ref)

    # logits = (x/||x||/temp) @ bank_tile.T — bf16 operands on the MXU, f32
    # accumulation; contract dim 1 against dim 1 (no transpose materialized).
    logits = lax.dot_general(
        xn_ref[...], f_ref[...],
        dimension_numbers=(((1,), (1,)), ((), ())),
        preferred_element_type=jnp.float32)              # (bt, tn) f32

    # Online softmax update — no padding mask: padded bank rows are exactly
    # zero so padded logits are exactly 0; corrected at finalize.
    m_old = m_ref[...]
    m_new = jnp.maximum(m_old, jnp.max(logits, axis=1, keepdims=True))
    l_ref[...] = (jnp.exp(m_old - m_new) * l_ref[...]
                  + jnp.sum(jnp.exp(logits - m_new), axis=1, keepdims=True))
    m_ref[...] = m_new

    @pl.when(k == nk - 1)
    def _finalize():
        m = m_ref[...]
        l = l_ref[...]
        if n_pad_cols:  # static: exact because padded bank rows are exactly 0
            l = l - jnp.float32(n_pad_cols) * jnp.exp(-m)
            l = jnp.maximum(l, jnp.float32(1e-30))
        lse_ref[...] = m + jnp.log(l)


def prepare_feature_bank(features, *, n_tile=None):
    """Pad + cast the memory bank to bf16 ONCE.

    The returned array is the persistent bank buffer (analogue of the module's
    `features` register_buffer); cache it across calls so the N x D pad/cast
    HBM round-trip is not paid on every forward.
    Returns (bank_bf16_padded, n_valid, tn).
    """
    N, D = features.shape
    D_pad = _round_up(D, 128)
    if n_tile is None:
        # Fatter N tiles when D is small (amortize per-step overhead); keep
        # the double-buffered bank tile modest when D is large (VMEM budget).
        n_tile = 2048 if D_pad <= 512 else (1024 if D_pad <= 2048 else 512)
    tn = min(_round_up(n_tile, 128), _round_up(N, 128))
    N_pad = _round_up(N, tn)
    bank = jnp.pad(features.astype(jnp.float32),
                   ((0, N_pad - N), (0, D_pad - D))).astype(jnp.bfloat16)
    return bank, N, tn


def cluster_memory_loss(inputs, indexes, bank, n_valid, tn, temp=0.05, *,
                        bn_tile=None):
    """Instance-wise loss of Memory_wise_v2_ori.forward as a Pallas TPU kernel.

    `bank` must come from prepare_feature_bank (pre-padded, bf16, zero-padded
    rows/cols) — keep it persistent across calls.
    """
    B, D = inputs.shape
    N_pad, D_pad = bank.shape
    assert D <= D_pad and N_pad % tn == 0

    # Batch tile: as large as practical — the whole bank is re-streamed from
    # HBM once per B tile, so minimizing B_pad//bt is the dominant lever.
    # (On v7x with very large B one could also want >=2 B blocks so both
    # TensorCores get work; with a single bank pass that is already optimal.)
    if bn_tile is None:
        bt = min(_round_up(B, 8), 256)
    else:
        bt = _round_up(bn_tile, 8)
    B_pad = _round_up(B, bt)

    # --- O(B*D) prep in the wrapper (negligible vs the O(B*N*D) kernel) ---
    inv_temp = float(1.0 / temp)
    x = inputs.astype(jnp.float32)
    ss = jnp.sum(x * x, axis=1, keepdims=True)
    scale = lax.rsqrt(jnp.maximum(ss, 1e-24)) * inv_temp   # F.normalize + 1/temp
    xn = (x * scale).astype(jnp.bfloat16)                  # (B, D) bf16

    # Target logit: one gather + row-dot here instead of an iota/compare/select
    # + XLU reduction on every (bt, tn) tile inside the kernel.
    idx = indexes.astype(jnp.int32)
    f_tgt = jnp.take(bank, idx, axis=0)[:, :D].astype(jnp.float32)   # (B, D)
    tgt = jnp.sum(xn.astype(jnp.float32) * f_tgt, axis=1)            # (B,) f32

    xn_p = jnp.pad(xn, ((0, B_pad - B), (0, D_pad - D)))

    grid = (B_pad // bt, N_pad // tn)
    n_pad_cols = int(N_pad - n_valid)
    kernel = functools.partial(_cm_lse_kernel, n_pad_cols=n_pad_cols)

    # Explicit VMEM budget (v5e default scoped is only 16 MiB; v7x physical is
    # 64 MiB) — tiles above are sized so this stays well under every part.
    vmem_est = (2 * bt * D_pad * 2      # xn block, double-buffered
                + 2 * tn * D_pad * 2    # bank tile, double-buffered
                + bt * tn * 4           # f32 logits temporary
                + 8 * bt * 4 + (1 << 20))
    vmem_limit = int(min(max(2 * vmem_est, 32 << 20), 48 << 20))

    cost = pl.CostEstimate(
        flops=2 * B_pad * N_pad * D_pad,
        transcendentals=B_pad * N_pad + 2 * B_pad,
        bytes_accessed=(xn_p.size * 2                      # xn, once
                        + bank.size * 2 * (B_pad // bt)    # bank, once per B tile
                        + B_pad * 4))

    lse = pl.pallas_call(
        kernel,
        out_shape=jax.ShapeDtypeStruct((B_pad, 1), jnp.float32),
        grid_spec=pltpu.PrefetchScalarGridSpec(
            num_scalar_prefetch=0,
            grid=grid,
            in_specs=[
                pl.BlockSpec((bt, D_pad), lambda i, k: (i, 0)),   # xn: resident per B tile
                pl.BlockSpec((tn, D_pad), lambda i, k: (k, 0)),   # bank: streamed over N
            ],
            out_specs=pl.BlockSpec((bt, 1), lambda i, k: (i, 0)),
            scratch_shapes=[
                pltpu.VMEM((bt, 1), jnp.float32),   # running max
                pltpu.VMEM((bt, 1), jnp.float32),   # running sum-exp
            ]),
        compiler_params=pltpu.CompilerParams(
            dimension_semantics=("parallel", "arbitrary"),
            vmem_limit_bytes=vmem_limit),
        cost_estimate=cost,
    )(xn_p, bank)

    # clamp_min(1e-8) on the softmax prob  <=>  min(lse - tgt, -log(1e-8))
    per_row = jnp.minimum(lse[:B, 0] - tgt, jnp.float32(_NEG_LOG_EPS))
    return jnp.mean(per_row)


def _reference_loss(inputs, indexes, features, temp=0.05):
    """Pure-JAX reference using the same bf16 quantization as the kernel."""
    ss = jnp.sum(inputs * inputs, axis=1, keepdims=True)
    scale = lax.rsqrt(jnp.maximum(ss, 1e-24)) * (1.0 / temp)
    xn = (inputs * scale).astype(jnp.bfloat16)
    f = features.astype(jnp.bfloat16)
    logits = jnp.dot(xn, f.T, preferred_element_type=jnp.float32)
    lse = jax.nn.logsumexp(logits, axis=1)
    tgt = jnp.take_along_axis(logits, indexes[:, None].astype(jnp.int32), axis=1)[:, 0]
    per_row = jnp.minimum(lse - tgt, jnp.float32(_NEG_LOG_EPS))
    return jnp.mean(per_row)


if __name__ == "__main__":
    key = jax.random.PRNGKey(0)
    k1, k2, k3 = jax.random.split(key, 3)

    B = 16              # batch
    num_features = 128  # D
    num_samples = 1024  # memory-bank rows (N)
    temp = 0.05

    inputs = jax.random.normal(k1, (B, num_features), dtype=jnp.float32)
    # The module zero-initializes the memory bank; fill it with unit-norm rows
    # (the state EM.backward maintains) so the forward pass is non-trivial.
    features = jax.random.normal(k2, (num_samples, num_features), dtype=jnp.float32)
    features = features / jnp.linalg.norm(features, axis=1, keepdims=True)
    indexes = jax.random.randint(k3, (B,), 0, num_samples, dtype=jnp.int32)

    # Persistent pre-padded bf16 bank: built once, reused across forward calls.
    bank, n_valid, tn = prepare_feature_bank(features)
    bank = jax.block_until_ready(bank)

    # TODO(synk): the intra-camera-wise loss branch (needs cam2uid/cam_mem state
    # built outside forward) and the EM backward-time memory-bank momentum update
    # are stateful/host-side side effects and are not implemented here; this
    # kernel covers the forward instance-wise cross-entropy path
    # (inswise_loss_total).
    loss = cluster_memory_loss(inputs, indexes, bank, n_valid, tn, temp=temp)
    loss = jax.block_until_ready(loss)

    ref = _reference_loss(inputs, indexes, features, temp=temp)
    assert jnp.allclose(loss, ref, rtol=1e-3, atol=1e-2), (loss, ref)
    print("KERNEL_OK")
</pallas_src>

<mosaic_0001>
module attributes {stable_mosaic.version = 11 : i64} {
  func.func @_cm_lse_kernel(%arg0: i32, %arg1: i32, %arg2: memref<16x128xbf16, #tpu.memory_space<vmem>>, %arg3: memref<1024x128xbf16, #tpu.memory_space<vmem>>, %arg4: memref<16x1xf32, #tpu.memory_space<vmem>>, %arg5: memref<16x1xf32, #tpu.memory_space<vmem>>, %arg6: memref<16x1xf32, #tpu.memory_space<vmem>>) attributes {dimension_semantics = [#tpu.dimension_semantics<parallel>, #tpu.dimension_semantics<arbitrary>], iteration_bounds = array<i64: 1, 1>, scalar_prefetch = 0 : i64, scratch_operands = 2 : i64, tpu.core_type = #tpu.core_type<tc>, window_params = [{transform_indices = @transform_0, window_bounds = array<i64: 16, 128>}, {transform_indices = @transform_1, window_bounds = array<i64: 1024, 128>}, {transform_indices = @transform_2, window_bounds = array<i64: 16, 1>}]} {
    %c0_i32 = arith.constant 0 : i32
    %0 = arith.cmpi eq, %arg1, %c0_i32 : i32
    %1 = arith.extui %0 : i1 to i32
    %c0_i32_0 = arith.constant 0 : i32
    %2 = arith.cmpi ne, %1, %c0_i32_0 : i32
    scf.if %2 {
      %cst_16 = arith.constant -1.000000e+30 : f32
      %25 = vector.broadcast %cst_16 : f32 to vector<16x1xf32>
      %c0_17 = arith.constant 0 : index
      %c0_18 = arith.constant 0 : index
      %26 = vector.load %arg5[%c0_17, %c0_18] : memref<16x1xf32, #tpu.memory_space<vmem>>, vector<16x1xf32>
      tpu.vector_store %arg5[%c0_17, %c0_18], %25 {strides = array<i32>} : memref<16x1xf32, #tpu.memory_space<vmem>>, vector<16x1xf32>,
      %cst_19 = arith.constant 0.000000e+00 : f32
      %27 = vector.broadcast %cst_19 : f32 to vector<16x1xf32>
      %c0_20 = arith.constant 0 : index
      %c0_21 = arith.constant 0 : index
      %28 = vector.load %arg6[%c0_20, %c0_21] : memref<16x1xf32, #tpu.memory_space<vmem>>, vector<16x1xf32>
      tpu.vector_store %arg6[%c0_20, %c0_21], %27 {strides = array<i32>} : memref<16x1xf32, #tpu.memory_space<vmem>>, vector<16x1xf32>,
    } else {
    }
    %c0 = arith.constant 0 : index
    %c0_1 = arith.constant 0 : index
    %3 = vector.load %arg2[%c0, %c0_1] : memref<16x128xbf16, #tpu.memory_space<vmem>>, vector<16x128xbf16>
    %c0_2 = arith.constant 0 : index
    %c0_3 = arith.constant 0 : index
    %4 = vector.load %arg3[%c0_2, %c0_3] : memref<1024x128xbf16, #tpu.memory_space<vmem>>, vector<1024x128xbf16>
    %cst = arith.constant dense<0.000000e+00> : vector<16x1024xf32>
    %5 = tpu.matmul %3, %4, %cst {dimension_numbers = #tpu.dot_dimension_numbers<[1], [1], [0], [0], [0, 0, 1, 0], [], []>} : vector<16x128xbf16>, vector<1024x128xbf16>, vector<16x1024xf32> -> vector<16x1024xf32>
    %c0_4 = arith.constant 0 : index
    %c0_5 = arith.constant 0 : index
    %6 = vector.load %arg5[%c0_4, %c0_5] : memref<16x1xf32, #tpu.memory_space<vmem>>, vector<16x1xf32>
    %cst_6 = arith.constant dense<0xFF800000> : vector<16xf32>
    %7 = vector.multi_reduction <maximumf>, %5, %cst_6 [1] : vector<16x1024xf32> to vector<16xf32>
    %8 = vector.shape_cast %7 : vector<16xf32> to vector<16x1xf32>
    %9 = arith.maximumf %6, %8 : vector<16x1xf32>
    %10 = arith.subf %6, %9 : vector<16x1xf32>
    %11 = math.exp %10 : vector<16x1xf32>
    %c0_7 = arith.constant 0 : index
    %c0_8 = arith.constant 0 : index
    %12 = vector.load %arg6[%c0_7, %c0_8] : memref<16x1xf32, #tpu.memory_space<vmem>>, vector<16x1xf32>
    %13 = arith.mulf %11, %12 : vector<16x1xf32>
    %14 = vector.broadcast %9 : vector<16x1xf32> to vector<16x1024xf32>
    %15 = arith.subf %5, %14 : vector<16x1024xf32>
    %16 = math.exp %15 : vector<16x1024xf32>
    %cst_9 = arith.constant dense<0.000000e+00> : vector<16xf32>
    %17 = vector.multi_reduction <add>, %16, %cst_9 [1] : vector<16x1024xf32> to vector<16xf32>
    %18 = vector.shape_cast %17 : vector<16xf32> to vector<16x1xf32>
    %19 = arith.addf %13, %18 : vector<16x1xf32>
    %c0_10 = arith.constant 0 : index
    %c0_11 = arith.constant 0 : index
    %20 = vector.load %arg6[%c0_10, %c0_11] : memref<16x1xf32, #tpu.memory_space<vmem>>, vector<16x1xf32>
    tpu.vector_store %arg6[%c0_10, %c0_11], %19 {strides = array<i32>} : memref<16x1xf32, #tpu.memory_space<vmem>>, vector<16x1xf32>,
    %c0_12 = arith.constant 0 : index
    %c0_13 = arith.constant 0 : index
    %21 = vector.load %arg5[%c0_12, %c0_13] : memref<16x1xf32, #tpu.memory_space<vmem>>, vector<16x1xf32>
    tpu.vector_store %arg5[%c0_12, %c0_13], %9 {strides = array<i32>} : memref<16x1xf32, #tpu.memory_space<vmem>>, vector<16x1xf32>,
    %c0_i32_14 = arith.constant 0 : i32
    %22 = arith.cmpi eq, %arg1, %c0_i32_14 : i32
    %23 = arith.extui %22 : i1 to i32
    %c0_i32_15 = arith.constant 0 : i32
    %24 = arith.cmpi ne, %23, %c0_i32_15 : i32
    scf.if %24 {
      %c0_16 = arith.constant 0 : index
      %c0_17 = arith.constant 0 : index
      %25 = vector.load %arg5[%c0_16, %c0_17] : memref<16x1xf32, #tpu.memory_space<vmem>>, vector<16x1xf32>
      %c0_18 = arith.constant 0 : index
      %c0_19 = arith.constant 0 : index
      %26 = vector.load %arg6[%c0_18, %c0_19] : memref<16x1xf32, #tpu.memory_space<vmem>>, vector<16x1xf32>
      %27 = math.log %26 : vector<16x1xf32>
      %28 = arith.addf %25, %27 : vector<16x1xf32>
      %c0_20 = arith.constant 0 : index
      %c0_21 = arith.constant 0 : index
      %29 = vector.load %arg4[%c0_20, %c0_21] : memref<16x1xf32, #tpu.memory_space<vmem>>, vector<16x1xf32>
      tpu.vector_store %arg4[%c0_20, %c0_21], %28 {strides = array<i32>} : memref<16x1xf32, #tpu.memory_space<vmem>>, vector<16x1xf32>,
    } else {
    }
    return
  }
  func.func @transform_0(%arg0: i32, %arg1: i32) -> (i32, i32) {
    %c0_i32 = arith.constant 0 : i32
    %c0_i32_0 = arith.constant 0 : i32
    return %arg0, %c0_i32 : i32, i32
  }
  func.func @transform_1(%arg0: i32, %arg1: i32) -> (i32, i32) {
    %c0_i32 = arith.constant 0 : i32
    %c0_i32_0 = arith.constant 0 : i32
    return %arg1, %c0_i32 : i32, i32
  }
  func.func @transform_2(%arg0: i32, %arg1: i32) -> (i32, i32) {
    %c0_i32 = arith.constant 0 : i32
    %c0_i32_0 = arith.constant 0 : i32
    return %arg0, %c0_i32 : i32, i32
  }
}

</mosaic_0001>

<llo_original>
// kernel: tpu_custom_call.1
$region0: #{tpu_custom_call.1}
  #allocation0 [shape = 'u32[]', space=smem, size = 0x4, offset = 0x4, fixed_abs, tag = 'smem constant byte address 0x4 - core index']
  #allocation1 [shape = 'u32[72,128]{1,0:T(1,128)}', space=vmem, size = 0x9000, scoped, tag = 'internal scratch']
  #allocation2 [shape = 'f32[16,1]{1,0:T(8,128)}', space=vmem, size = 0x2000, scoped, tag = 'scratch operand']
  #allocation3 [shape = 'f32[16,1]{1,0:T(8,128)}', space=vmem, size = 0x2000, scoped, tag = 'scratch operand']
  %s0 = inlined_call_operand.hbm [shape: bf16[16,128], index: 0, kind: input, shape index: {}]
  %s1 = inlined_call_operand.hbm [shape: bf16[1024,128], index: 1, kind: input, shape index: {}]
  %s2 = inlined_call_operand.vmem [shape: f32[16,1], index: 2, kind: output, shape index: {}]
  %s3 = sld [smem:[#allocation0]]
  $region34: #{tpu_custom_call.1} parent=0
    _
  %s5 = ssub.s32 1, %s3
  %s6 = scalar_select 0, %s5, %s3
  $region1: #{tpu_custom_call.1} parent=0
    #allocation4 [shape = 'u8[4096]{0}', space=vmem, size = 0x1000, scoped, tag = 'input window, operand 0, single buffered']
    #allocation5 [shape = 's32[1]{0}', space=sflag, size = 0x4, scoped, tag = 'scoped memory for tpu_custom_call.1']
    #allocation6 [shape = 'u8[262144]{0}', space=vmem, size = 0x40000, scoped, tag = 'input window, operand 1, single buffered']
    #allocation7 [shape = 's32[1]{0}', space=sflag, size = 0x4, scoped, tag = 'scoped memory for tpu_custom_call.1']
    %7 = vsyncpa [#allocation5], 0
    %8 = vsyncpa [#allocation7], 0
    // Predicated region
    $region2: #{tpu_custom_call.1} parent=1 // pred_check
      _
    $region3: #{tpu_custom_call.1} parent=1 // pred_check_branch
      %10 = sbr.rel (0) target = $region5
    $region4: #{tpu_custom_call.1} parent=1 // pred_region
      %12 = vsyncadd [#allocation5], 0
      %s13 = sshll.u32 %s0, 4
      %s14 = int_to_ptr.hbm [resolvable:$true] %s13
      %s15 = sshll.u32 [#allocation4], 4
      %s16 = int_to_ptr.vmem [resolvable:$true] %s15
      %21 = dma.hbm_to_vmem [thread:$0]  %s14, 128, %s16, [#allocation5], 64, 64, 4
    $region5: #{tpu_custom_call.1} parent=1 // pred_fallthru
      _
    // Predicated region
    $region6: #{tpu_custom_call.1} parent=1 // pred_check
      _
    $region7: #{tpu_custom_call.1} parent=1 // pred_check_branch
      %23 = sbr.rel (0) target = $region9
    $region8: #{tpu_custom_call.1} parent=1 // pred_region
      %25 = vsyncadd [#allocation7], 0
      %s26 = sshll.u32 %s1, 4
      %s27 = int_to_ptr.hbm [resolvable:$true] %s26
      %s28 = sshll.u32 [#allocation6], 4
      %s29 = int_to_ptr.vmem [resolvable:$true] %s28
      %34 = dma.hbm_to_vmem [thread:$0]  %s27, 8192, %s29, [#allocation7], 64, 64, 4
    $region9: #{tpu_custom_call.1} parent=1 // pred_fallthru
      _
    // Predicated region
    $region10: #{tpu_custom_call.1} parent=1 // pred_check
      _
    $region11: #{tpu_custom_call.1} parent=1 // pred_check_branch
      %36 = sbr.rel (0) target = $region13
    $region12: #{tpu_custom_call.1} parent=1 // pred_region
      %38 = dma.done [#allocation5], 128
    $region13: #{tpu_custom_call.1} parent=1 // pred_fallthru
      _
    // Predicated region
    $region14: #{tpu_custom_call.1} parent=1 // pred_check
      _
    $region15: #{tpu_custom_call.1} parent=1 // pred_check_branch
      %40 = sbr.rel (0) target = $region17
    $region16: #{tpu_custom_call.1} parent=1 // pred_region
      %42 = dma.done [#allocation7], 8192
    $region17: #{tpu_custom_call.1} parent=1 // pred_fallthru
      _
    %p43 = scmp.eq.s32.totalorder 0, 0
    // Predicated region
    $region18: #{tpu_custom_call.1} parent=1 // pred_check
      %p44 = pneg %p43
    $region19: #{tpu_custom_call.1} parent=1 // pred_check_branch
      %46 = sbr.rel (%p44) target = $region21
    $region20: #{tpu_custom_call.1} parent=1 // pred_region
      %vm47 = vcmask 7168
      %48 = vst.msk [vmem:[#allocation2] sm:$0xff] %vm47, -1e+30
      %49 = vst.msk [vmem:[#allocation2 + $0x8] sm:$0xff] %vm47, -1e+30
      %50 = vst.msk [vmem:[#allocation3] sm:$0xff] %vm47, 0.0
      %51 = vst.msk [vmem:[#allocation3 + $0x8] sm:$0xff] %vm47, 0.0
    $region21: #{tpu_custom_call.1} parent=1 // pred_fallthru
      _
    %v52 = vld [vmem:[#allocation4] sm:$0xf]
    %v53 = vld [vmem:[#allocation4 + $0x4] sm:$0xf]
    %v54 = vld [vmem:[#allocation6] sm:$0xf]
    %v55 = vld [vmem:[#allocation6 + $0x4] sm:$0xf]
    %v56 = vld [vmem:[#allocation6 + $0x8] sm:$0xf]
    %v57 = vld [vmem:[#allocation6 + $0xc] sm:$0xf]
    %v58 = vld [vmem:[#allocation6 + $0x10] sm:$0xf]
    %v59 = vld [vmem:[#allocation6 + $0x14] sm:$0xf]
    %v60 = vld [vmem:[#allocation6 + $0x18] sm:$0xf]
    %v61 = vld [vmem:[#allocation6 + $0x1c] sm:$0xf]
    %v62 = vld [vmem:[#allocation6 + $0x20] sm:$0xf]
    %v63 = vld [vmem:[#allocation6 + $0x24] sm:$0xf]
    %v64 = vld [vmem:[#allocation6 + $0x28] sm:$0xf]
    %v65 = vld [vmem:[#allocation6 + $0x2c] sm:$0xf]
    %v66 = vld [vmem:[#allocation6 + $0x30] sm:$0xf]
    %v67 = vld [vmem:[#allocation6 + $0x34] sm:$0xf]
    %v68 = vld [vmem:[#allocation6 + $0x38] sm:$0xf]
    %v69 = vld [vmem:[#allocation6 + $0x3c] sm:$0xf]
    %v70 = vld [vmem:[#allocation6 + $0x40] sm:$0xf]
    %v71 = vld [vmem:[#allocation6 + $0x44] sm:$0xf]
    %v72 = vld [vmem:[#allocation6 + $0x48] sm:$0xf]
    %v73 = vld [vmem:[#allocation6 + $0x4c] sm:$0xf]
    %v74 = vld [vmem:[#allocation6 + $0x50] sm:$0xf]
    %v75 = vld [vmem:[#allocation6 + $0x54] sm:$0xf]
    %v76 = vld [vmem:[#allocation6 + $0x58] sm:$0xf]
    %v77 = vld [vmem:[#allocation6 + $0x5c] sm:$0xf]
    %v78 = vld [vmem:[#allocation6 + $0x60] sm:$0xf]
    %v79 = vld [vmem:[#allocation6 + $0x64] sm:$0xf]
    %v80 = vld [vmem:[#allocation6 + $0x68] sm:$0xf]
    %v81 = vld [vmem:[#allocation6 + $0x6c] sm:$0xf]
    %v82 = vld [vmem:[#allocation6 + $0x70] sm:$0xf]
    %v83 = vld [vmem:[#allocation6 + $0x74] sm:$0xf]
    %v84 = vld [vmem:[#allocation6 + $0x78] sm:$0xf]
    %v85 = vld [vmem:[#allocation6 + $0x7c] sm:$0xf]
    %v86 = vld [vmem:[#allocation6 + $0x80] sm:$0xf]
    %v87 = vld [vmem:[#allocation6 + $0x84] sm:$0xf]
    %v88 = vld [vmem:[#allocation6 + $0x88] sm:$0xf]
    %v89 = vld [vmem:[#allocation6 + $0x8c] sm:$0xf]
    %v90 = vld [vmem:[#allocation6 + $0x90] sm:$0xf]
    %v91 = vld [vmem:[#allocation6 + $0x94] sm:$0xf]
    %v92 = vld [vmem:[#allocation6 + $0x98] sm:$0xf]
    %v93 = vld [vmem:[#allocation6 + $0x9c] sm:$0xf]
    %v94 = vld [vmem:[#allocation6 + $0xa0] sm:$0xf]
    %v95 = vld [vmem:[#allocation6 + $0xa4] sm:$0xf]
    %v96 = vld [vmem:[#allocation6 + $0xa8] sm:$0xf]
    %v97 = vld [vmem:[#allocation6 + $0xac] sm:$0xf]
    %v98 = vld [vmem:[#allocation6 + $0xb0] sm:$0xf]
    %v99 = vld [vmem:[#allocation6 + $0xb4] sm:$0xf]
    %v100 = vld [vmem:[#allocation6 + $0xb8] sm:$0xf]
    %v101 = vld [vmem:[#allocation6 + $0xbc] sm:$0xf]
    %v102 = vld [vmem:[#allocation6 + $0xc0] sm:$0xf]
    %v103 = vld [vmem:[#allocation6 + $0xc4] sm:$0xf]
    %v104 = vld [vmem:[#allocation6 + $0xc8] sm:$0xf]
    %v105 = vld [vmem:[#allocation6 + $0xcc] sm:$0xf]
    %v106 = vld [vmem:[#allocation6 + $0xd0] sm:$0xf]
    %v107 = vld [vmem:[#allocation6 + $0xd4] sm:$0xf]
    %v108 = vld [vmem:[#allocation6 + $0xd8] sm:$0xf]
    %v109 = vld [vmem:[#allocation6 + $0xdc] sm:$0xf]
    %v110 = vld [vmem:[#allocation6 + $0xe0] sm:$0xf]
    %v111 = vld [vmem:[#allocation6 + $0xe4] sm:$0xf]
    %v112 = vld [vmem:[#allocation6 + $0xe8] sm:$0xf]
    %v113 = vld [vmem:[#allocation6 + $0xec] sm:$0xf]
    %v114 = vld [vmem:[#allocation6 + $0xf0] sm:$0xf]
    %v115 = vld [vmem:[#allocation6 + $0xf4] sm:$0xf]
    %v116 = vld [vmem:[#allocation6 + $0xf8] sm:$0xf]
    %v117 = vld [vmem:[#allocation6 + $0xfc] sm:$0xf]
    %v118 = vld [vmem:[#allocation6 + $0x100] sm:$0xf]
    %v119 = vld [vmem:[#allocation6 + $0x104] sm:$0xf]
    %v120 = vld [vmem:[#allocation6 + $0x108] sm:$0xf]
    %v121 = vld [vmem:[#allocation6 + $0x10c] sm:$0xf]
    %v122 = vld [vmem:[#allocation6 + $0x110] sm:$0xf]
    %v123 = vld [vmem:[#allocation6 + $0x114] sm:$0xf]
    %v124 = vld [vmem:[#allocation6 + $0x118] sm:$0xf]
    %v125 = vld [vmem:[#allocation6 + $0x11c] sm:$0xf]
    %v126 = vld [vmem:[#allocation6 + $0x120] sm:$0xf]
    %v127 = vld [vmem:[#allocation6 + $0x124] sm:$0xf]
    %v128 = vld [vmem:[#allocation6 + $0x128] sm:$0xf]
    %v129 = vld [vmem:[#allocation6 + $0x12c] sm:$0xf]
    %v130 = vld [vmem:[#allocation6 + $0x130] sm:$0xf]
    %v131 = vld [vmem:[#allocation6 + $0x134] sm:$0xf]
    %v132 = vld [vmem:[#allocation6 + $0x138] sm:$0xf]
    %v133 = vld [vmem:[#allocation6 + $0x13c] sm:$0xf]
    %v134 = vld [vmem:[#allocation6 + $0x140] sm:$0xf]
    %v135 = vld [vmem:[#allocation6 + $0x144] sm:$0xf]
    %v136 = vld [vmem:[#allocation6 + $0x148] sm:$0xf]
    %v137 = vld [vmem:[#allocation6 + $0x14c] sm:$0xf]
    %v138 = vld [vmem:[#allocation6 + $0x150] sm:$0xf]
    %v139 = vld [vmem:[#allocation6 + $0x154] sm:$0xf]
    %v140 = vld [vmem:[#allocation6 + $0x158] sm:$0xf]
    %v141 = vld [vmem:[#allocation6 + $0x15c] sm:$0xf]
    %v142 = vld [vmem:[#allocation6 + $0x160] sm:$0xf]
    %v143 = vld [vmem:[#allocation6 + $0x164] sm:$0xf]
    %v144 = vld [vmem:[#allocation6 + $0x168] sm:$0xf]
    %v145 = vld [vmem:[#allocation6 + $0x16c] sm:$0xf]
    %v146 = vld [vmem:[#allocation6 + $0x170] sm:$0xf]
    %v147 = vld [vmem:[#allocation6 + $0x174] sm:$0xf]
    %v148 = vld [vmem:[#allocation6 + $0x178] sm:$0xf]
    %v149 = vld [vmem:[#allocation6 + $0x17c] sm:$0xf]
    %v150 = vld [vmem:[#allocation6 + $0x180] sm:$0xf]
    %v151 = vld [vmem:[#allocation6 + $0x184] sm:$0xf]
    %v152 = vld [vmem:[#allocation6 + $0x188] sm:$0xf]
    %v153 = vld [vmem:[#allocation6 + $0x18c] sm:$0xf]
    %v154 = vld [vmem:[#allocation6 + $0x190] sm:$0xf]
    %v155 = vld [vmem:[#allocation6 + $0x194] sm:$0xf]
    %v156 = vld [vmem:[#allocation6 + $0x198] sm:$0xf]
    %v157 = vld [vmem:[#allocation6 + $0x19c] sm:$0xf]
    %v158 = vld [vmem:[#allocation6 + $0x1a0] sm:$0xf]
    %v159 = vld [vmem:[#allocation6 + $0x1a4] sm:$0xf]
    %v160 = vld [vmem:[#allocation6 + $0x1a8] sm:$0xf]
    %v161 = vld [vmem:[#allocation6 + $0x1ac] sm:$0xf]
    %v162 = vld [vmem:[#allocation6 + $0x1b0] sm:$0xf]
    %v163 = vld [vmem:[#allocation6 + $0x1b4] sm:$0xf]
    %v164 = vld [vmem:[#allocation6 + $0x1b8] sm:$0xf]
    %v165 = vld [vmem:[#allocation6 + $0x1bc] sm:$0xf]
    %v166 = vld [vmem:[#allocation6 + $0x1c0] sm:$0xf]
    %v167 = vld [vmem:[#allocation6 + $0x1c4] sm:$0xf]
    %v168 = vld [vmem:[#allocation6 + $0x1c8] sm:$0xf]
    %v169 = vld [vmem:[#allocation6 + $0x1cc] sm:$0xf]
    %v170 = vld [vmem:[#allocation6 + $0x1d0] sm:$0xf]
    %v171 = vld [vmem:[#allocation6 + $0x1d4] sm:$0xf]
    %v172 = vld [vmem:[#allocation6 + $0x1d8] sm:$0xf]
    %v173 = vld [vmem:[#allocation6 + $0x1dc] sm:$0xf]
    %v174 = vld [vmem:[#allocation6 + $0x1e0] sm:$0xf]
    %v175 = vld [vmem:[#allocation6 + $0x1e4] sm:$0xf]
    %v176 = vld [vmem:[#allocation6 + $0x1e8] sm:$0xf]
    %v177 = vld [vmem:[#allocation6 + $0x1ec] sm:$0xf]
    %v178 = vld [vmem:[#allocation6 + $0x1f0] sm:$0xf]
    %v179 = vld [vmem:[#allocation6 + $0x1f4] sm:$0xf]
    %v180 = vld [vmem:[#allocation6 + $0x1f8] sm:$0xf]
    %v181 = vld [vmem:[#allocation6 + $0x1fc] sm:$0xf]
    %v184 = vunpack.c.l.b16 %v52
    %v185 = vunpack.c.l.b16 %v53
    %v186 = vpack.c.b16 %v185, %v184
    %v316 = vunpack.c.l.b16 %v54
    %v317 = vunpack.c.l.b16 %v55
    %v318 = vunpack.c.l.b16 %v56
    %v319 = vunpack.c.l.b16 %v57
    %v320 = vunpack.c.l.b16 %v58
    %v321 = vunpack.c.l.b16 %v59
    %v322 = vunpack.c.l.b16 %v60
    %v323 = vunpack.c.l.b16 %v61
    %v324 = vunpack.c.l.b16 %v62
    %v325 = vunpack.c.l.b16 %v63
    %v326 = vunpack.c.l.b16 %v64
    %v327 = vunpack.c.l.b16 %v65
    %v328 = vunpack.c.l.b16 %v66
    %v329 = vunpack.c.l.b16 %v67
    %v330 = vunpack.c.l.b16 %v68
    %v331 = vunpack.c.l.b16 %v69
    %v332 = vunpack.c.l.b16 %v70
    %v333 = vunpack.c.l.b16 %v71
    %v334 = vunpack.c.l.b16 %v72
    %v335 = vunpack.c.l.b16 %v73
    %v336 = vunpack.c.l.b16 %v74
    %v337 = vunpack.c.l.b16 %v75
    %v338 = vunpack.c.l.b16 %v76
    %v339 = vunpack.c.l.b16 %v77
    %v340 = vunpack.c.l.b16 %v78
    %v341 = vunpack.c.l.b16 %v79
    %v342 = vunpack.c.l.b16 %v80
    %v343 = vunpack.c.l.b16 %v81
    %v344 = vunpack.c.l.b16 %v82
    %v345 = vunpack.c.l.b16 %v83
    %v346 = vunpack.c.l.b16 %v84
    %v347 = vunpack.c.l.b16 %v85
    %v348 = vunpack.c.l.b16 %v86
    %v349 = vunpack.c.l.b16 %v87
    %v350 = vunpack.c.l.b16 %v88
    %v351 = vunpack.c.l.b16 %v89
    %v352 = vunpack.c.l.b16 %v90
    %v353 = vunpack.c.l.b16 %v91
    %v354 = vunpack.c.l.b16 %v92
    %v355 = vunpack.c.l.b16 %v93
    %v356 = vunpack.c.l.b16 %v94
    %v357 = vunpack.c.l.b16 %v95
    %v358 = vunpack.c.l.b16 %v96
    %v359 = vunpack.c.l.b16 %v97
    %v360 = vunpack.c.l.b16 %v98
    %v361 = vunpack.c.l.b16 %v99
    %v362 = vunpack.c.l.b16 %v100
    %v363 = vunpack.c.l.b16 %v101
    %v364 = vunpack.c.l.b16 %v102
    %v365 = vunpack.c.l.b16 %v103
    %v366 = vunpack.c.l.b16 %v104
    %v367 = vunpack.c.l.b16 %v105
    %v368 = vunpack.c.l.b16 %v106
    %v369 = vunpack.c.l.b16 %v107
    %v370 = vunpack.c.l.b16 %v108
    %v371 = vunpack.c.l.b16 %v109
    %v372 = vunpack.c.l.b16 %v110
    %v373 = vunpack.c.l.b16 %v111
    %v374 = vunpack.c.l.b16 %v112
    %v375 = vunpack.c.l.b16 %v113
    %v376 = vunpack.c.l.b16 %v114
    %v377 = vunpack.c.l.b16 %v115
    %v378 = vunpack.c.l.b16 %v116
    %v379 = vunpack.c.l.b16 %v117
    %v380 = vunpack.c.l.b16 %v118
    %v381 = vunpack.c.l.b16 %v119
    %v382 = vunpack.c.l.b16 %v120
    %v383 = vunpack.c.l.b16 %v121
    %v384 = vunpack.c.l.b16 %v122
    %v385 = vunpack.c.l.b16 %v123
    %v386 = vunpack.c.l.b16 %v124
    %v387 = vunpack.c.l.b16 %v125
    %v388 = vunpack.c.l.b16 %v126
    %v389 = vunpack.c.l.b16 %v127
    %v390 = vunpack.c.l.b16 %v128
    %v391 = vunpack.c.l.b16 %v129
    %v392 = vunpack.c.l.b16 %v130
    %v393 = vunpack.c.l.b16 %v131
    %v394 = vunpack.c.l.b16 %v132
    %v395 = vunpack.c.l.b16 %v133
    %v396 = vunpack.c.l.b16 %v134
    %v397 = vunpack.c.l.b16 %v135
    %v398 = vunpack.c.l.b16 %v136
    %v399 = vunpack.c.l.b16 %v137
    %v400 = vunpack.c.l.b16 %v138
    %v401 = vunpack.c.l.b16 %v139
    %v402 = vunpack.c.l.b16 %v140
    %v403 = vunpack.c.l.b16 %v141
    %v404 = vunpack.c.l.b16 %v142
    %v405 = vunpack.c.l.b16 %v143
    %v406 = vunpack.c.l.b16 %v144
    %v407 = vunpack.c.l.b16 %v145
    %v408 = vunpack.c.l.b16 %v146
    %v409 = vunpack.c.l.b16 %v147
    %v410 = vunpack.c.l.b16 %v148
    %v411 = vunpack.c.l.b16 %v149
    %v412 = vunpack.c.l.b16 %v150
    %v413 = vunpack.c.l.b16 %v151
    %v414 = vunpack.c.l.b16 %v152
    %v415 = vunpack.c.l.b16 %v153
    %v416 = vunpack.c.l.b16 %v154
    %v417 = vunpack.c.l.b16 %v155
    %v418 = vunpack.c.l.b16 %v156
    %v419 = vunpack.c.l.b16 %v157
    %v420 = vunpack.c.l.b16 %v158
    %v421 = vunpack.c.l.b16 %v159
    %v422 = vunpack.c.l.b16 %v160
    %v423 = vunpack.c.l.b16 %v161
    %v424 = vunpack.c.l.b16 %v162
    %v425 = vunpack.c.l.b16 %v163
    %v426 = vunpack.c.l.b16 %v164
    %v427 = vunpack.c.l.b16 %v165
    %v428 = vunpack.c.l.b16 %v166
    %v429 = vunpack.c.l.b16 %v167
    %v430 = vunpack.c.l.b16 %v168
    %v431 = vunpack.c.l.b16 %v169
    %v432 = vunpack.c.l.b16 %v170
    %v433 = vunpack.c.l.b16 %v171
    %v434 = vunpack.c.l.b16 %v172
    %v435 = vunpack.c.l.b16 %v173
    %v436 = vunpack.c.l.b16 %v174
    %v437 = vunpack.c.l.b16 %v175
    %v438 = vunpack.c.l.b16 %v176
    %v439 = vunpack.c.l.b16 %v177
    %v440 = vunpack.c.l.b16 %v178
    %v441 = vunpack.c.l.b16 %v179
    %v442 = vunpack.c.l.b16 %v180
    %v443 = vunpack.c.l.b16 %v181
    %v444 = vpack.c.b16 %v317, %v316
    %v445 = vpack.c.b16 %v319, %v318
    %v446 = vpack.c.b16 %v321, %v320
    %v447 = vpack.c.b16 %v323, %v322
    %v448 = vpack.c.b16 %v325, %v324
    %v449 = vpack.c.b16 %v327, %v326
    %v450 = vpack.c.b16 %v329, %v328
    %v451 = vpack.c.b16 %v331, %v330
    %v452 = vpack.c.b16 %v333, %v332
    %v453 = vpack.c.b16 %v335, %v334
    %v454 = vpack.c.b16 %v337, %v336
    %v455 = vpack.c.b16 %v339, %v338
    %v456 = vpack.c.b16 %v341, %v340
    %v457 = vpack.c.b16 %v343, %v342
    %v458 = vpack.c.b16 %v345, %v344
    %v459 = vpack.c.b16 %v347, %v346
    %v460 = vpack.c.b16 %v349, %v348
    %v461 = vpack.c.b16 %v351, %v350
    %v462 = vpack.c.b16 %v353, %v352
    %v463 = vpack.c.b16 %v355, %v354
    %v464 = vpack.c.b16 %v357, %v356
    %v465 = vpack.c.b16 %v359, %v358
    %v466 = vpack.c.b16 %v361, %v360
    %v467 = vpack.c.b16 %v363, %v362
    %v468 = vpack.c.b16 %v365, %v364
    %v469 = vpack.c.b16 %v367, %v366
    %v470 = vpack.c.b16 %v369, %v368
    %v471 = vpack.c.b16 %v371, %v370
    %v472 = vpack.c.b16 %v373, %v372
    %v473 = vpack.c.b16 %v375, %v374
    %v474 = vpack.c.b16 %v377, %v376
    %v475 = vpack.c.b16 %v379, %v378
    %v476 = vpack.c.b16 %v381, %v380
    %v477 = vpack.c.b16 %v383, %v382
    %v478 = vpack.c.b16 %v385, %v384
    %v479 = vpack.c.b16 %v387, %v386
    %v480 = vpack.c.b16 %v389, %v388
    %v481 = vpack.c.b16 %v391, %v390
    %v482 = vpack.c.b16 %v393, %v392
    %v483 = vpack.c.b16 %v395, %v394
    %v484 = vpack.c.b16 %v397, %v396
    %v485 = vpack.c.b16 %v399, %v398
    %v486 = vpack.c.b16 %v401, %v400
    %v487 = vpack.c.b16 %v403, %v402
    %v488 = vpack.c.b16 %v405, %v404
    %v489 = vpack.c.b16 %v407, %v406
    %v490 = vpack.c.b16 %v409, %v408
    %v491 = vpack.c.b16 %v411, %v410
    %v492 = vpack.c.b16 %v413, %v412
    %v493 = vpack.c.b16 %v415, %v414
    %v494 = vpack.c.b16 %v417, %v416
    %v495 = vpack.c.b16 %v419, %v418
    %v496 = vpack.c.b16 %v421, %v420
    %v497 = vpack.c.b16 %v423, %v422
    %v498 = vpack.c.b16 %v425, %v424
    %v499 = vpack.c.b16 %v427, %v426
    %v500 = vpack.c.b16 %v429, %v428
    %v501 = vpack.c.b16 %v431, %v430
    %v502 = vpack.c.b16 %v433, %v432
    %v503 = vpack.c.b16 %v435, %v434
    %v504 = vpack.c.b16 %v437, %v436
    %v505 = vpack.c.b16 %v439, %v438
    %v506 = vpack.c.b16 %v441, %v440
    %v507 = vpack.c.b16 %v443, %v442
    %572 = vmatpush.bf16.xpose.msra.mxu0 %v451
    %573 = vmatpush.bf16.xpose.msra.mxu0 %v450
    %574 = vmatpush.bf16.xpose.msra.mxu0 %v449
    %575 = vmatpush.bf16.xpose.msra.mxu0 %v448
    %576 = vmatpush.bf16.xpose.msra.mxu0 %v447
    %577 = vmatpush.bf16.xpose.msra.mxu0 %v446
    %578 = vmatpush.bf16.xpose.msra.mxu0 %v445
    %579 = vmatpush.bf16.xpose.msra.mxu0 %v444
    %580 = vmatmul.bf16.gmra.mxu0 %v186
    %v581 = vpop.f32.mrf.mxu0
    %v582 = vadd.f32 0.0, %v581
    %v583 = vpop.f32.mrf.mxu0
    %v584 = vadd.f32 0.0, %v583
    %585 = vdwg.mxu0
    %586 = vmatpush.bf16.xpose.msra.mxu0 %v459
    %587 = vmatpush.bf16.xpose.msra.mxu0 %v458
    %588 = vmatpush.bf16.xpose.msra.mxu0 %v457
    %589 = vmatpush.bf16.xpose.msra.mxu0 %v456
    %590 = vmatpush.bf16.xpose.msra.mxu0 %v455
    %591 = vmatpush.bf16.xpose.msra.mxu0 %v454
    %592 = vmatpush.bf16.xpose.msra.mxu0 %v453
    %593 = vmatpush.bf16.xpose.msra.mxu0 %v452
    %594 = vmatmul.bf16.gmra.mxu0 %v186
    %v595 = vpop.f32.mrf.mxu0
    %v596 = vadd.f32 0.0, %v595
    %v597 = vpop.f32.mrf.mxu0
    %v598 = vadd.f32 0.0, %v597
    %599 = vdwg.mxu0
    %600 = vmatpush.bf16.xpose.msra.mxu0 %v467
    %601 = vmatpush.bf16.xpose.msra.mxu0 %v466
    %602 = vmatpush.bf16.xpose.msra.mxu0 %v465
    %603 = vmatpush.bf16.xpose.msra.mxu0 %v464
    %604 = vmatpush.bf16.xpose.msra.mxu0 %v463
    %605 = vmatpush.bf16.xpose.msra.mxu0 %v462
    %606 = vmatpush.bf16.xpose.msra.mxu0 %v461
    %607 = vmatpush.bf16.xpose.msra.mxu0 %v460
    %608 = vmatmul.bf16.gmra.mxu0 %v186
    %v609 = vpop.f32.mrf.mxu0
    %v610 = vadd.f32 0.0, %v609
    %v611 = vpop.f32.mrf.mxu0
    %v612 = vadd.f32 0.0, %v611
    %613 = vdwg.mxu0
    %614 = vmatpush.bf16.xpose.msra.mxu0 %v475
    %615 = vmatpush.bf16.xpose.msra.mxu0 %v474
    %616 = vmatpush.bf16.xpose.msra.mxu0 %v473
    %617 = vmatpush.bf16.xpose.msra.mxu0 %v472
    %618 = vmatpush.bf16.xpose.msra.mxu0 %v471
    %619 = vmatpush.bf16.xpose.msra.mxu0 %v470
    %620 = vmatpush.bf16.xpose.msra.mxu0 %v469
    %621 = vmatpush.bf16.xpose.msra.mxu0 %v468
    %622 = vmatmul.bf16.gmra.mxu0 %v186
    %v623 = vpop.f32.mrf.mxu0
    %v624 = vadd.f32 0.0, %v623
    %v625 = vpop.f32.mrf.mxu0
    %v626 = vadd.f32 0.0, %v625
    %627 = vdwg.mxu0
    %628 = vmatpush.bf16.xpose.msra.mxu0 %v483
    %629 = vmatpush.bf16.xpose.msra.mxu0 %v482
    %630 = vmatpush.bf16.xpose.msra.mxu0 %v481
    %631 = vmatpush.bf16.xpose.msra.mxu0 %v480
    %632 = vmatpush.bf16.xpose.msra.mxu0 %v479
    %633 = vmatpush.bf16.xpose.msra.mxu0 %v478
    %634 = vmatpush.bf16.xpose.msra.mxu0 %v477
    %635 = vmatpush.bf16.xpose.msra.mxu0 %v476
    %636 = vmatmul.bf16.gmra.mxu0 %v186
    %v637 = vpop.f32.mrf.mxu0
    %v638 = vadd.f32 0.0, %v637
    %v639 = vpop.f32.mrf.mxu0
    %v640 = vadd.f32 0.0, %v639
    %641 = vdwg.mxu0
    %642 = vmatpush.bf16.xpose.msra.mxu0 %v491
    %643 = vmatpush.bf16.xpose.msra.mxu0 %v490
    %644 = vmatpush.bf16.xpose.msra.mxu0 %v489
    %645 = vmatpush.bf16.xpose.msra.mxu0 %v488
    %646 = vmatpush.bf16.xpose.msra.mxu0 %v487
    %647 = vmatpush.bf16.xpose.msra.mxu0 %v486
    %648 = vmatpush.bf16.xpose.msra.mxu0 %v485
    %649 = vmatpush.bf16.xpose.msra.mxu0 %v484
    %650 = vmatmul.bf16.gmra.mxu0 %v186
    %v651 = vpop.f32.mrf.mxu0
    %v652 = vadd.f32 0.0, %v651
    %v653 = vpop.f32.mrf.mxu0
    %v654 = vadd.f32 0.0, %v653
    %655 = vdwg.mxu0
    %656 = vmatpush.bf16.xpose.msra.mxu0 %v499
    %657 = vmatpush.bf16.xpose.msra.mxu0 %v498
    %658 = vmatpush.bf16.xpose.msra.mxu0 %v497
    %659 = vmatpush.bf16.xpose.msra.mxu0 %v496
    %660 = vmatpush.bf16.xpose.msra.mxu0 %v495
    %661 = vmatpush.bf16.xpose.msra.mxu0 %v494
    %662 = vmatpush.bf16.xpose.msra.mxu0 %v493
    %663 = vmatpush.bf16.xpose.msra.mxu0 %v492
    %664 = vmatmul.bf16.gmra.mxu0 %v186
    %v665 = vpop.f32.mrf.mxu0
    %v666 = vadd.f32 0.0, %v665
    %v667 = vpop.f32.mrf.mxu0
    %v668 = vadd.f32 0.0, %v667
    %669 = vdwg.mxu0
    %670 = vmatpush.bf16.xpose.msra.mxu0 %v507
    %671 = vmatpush.bf16.xpose.msra.mxu0 %v506
    %672 = vmatpush.bf16.xpose.msra.mxu0 %v505
    %673 = vmatpush.bf16.xpose.msra.mxu0 %v504
    %674 = vmatpush.bf16.xpose.msra.mxu0 %v503
    %675 = vmatpush.bf16.xpose.msra.mxu0 %v502
    %676 = vmatpush.bf16.xpose.msra.mxu0 %v501
    %677 = vmatpush.bf16.xpose.msra.mxu0 %v500
    %678 = vmatmul.bf16.gmra.mxu0 %v186
    %v679 = vpop.f32.mrf.mxu0
    %v680 = vadd.f32 0.0, %v679
    %v681 = vpop.f32.mrf.mxu0
    %v682 = vadd.f32 0.0, %v681
    %683 = vdwg.mxu0
    %v684 = vld [vmem:[#allocation2] sm:$0xff]
    %v685 = vld [vmem:[#allocation2 + $0x8] sm:$0xff]
    %v686 = vmax.f32 %v582, %v610
    %v687 = vmax.f32 %v596, %v624
    %v688 = vmax.f32 %v686, %v638
    %v689 = vmax.f32 %v687, %v652
    %v690 = vmax.f32 %v688, %v666
    %v691 = vmax.f32 %v689, %v680
    %v692 = vmax.f32 %v690, %v691
    %693 = vmax.xlane.f32.xlu0 %v692
    %v694 = vpop.xlane.xlu0 %693
    %v695 = vmax.f32 %v584, %v612
    %v696 = vmax.f32 %v598, %v626
    %v697 = vmax.f32 %v695, %v640
    %v698 = vmax.f32 %v696, %v654
    %v699 = vmax.f32 %v697, %v668
    %v700 = vmax.f32 %v698, %v682
    %v701 = vmax.f32 %v699, %v700
    %702 = vmax.xlane.f32.xlu0 %v701
    %v703 = vpop.xlane.xlu0 %702
    %v704 = vmax.f32 %v684, %v694
    %v705 = vmax.f32 %v685, %v703
    %v706 = vsub.f32 %v684, %v704
    %v707 = vsub.f32 %v685, %v705
    %v708 = vmul.f32 %v706, 1.442695
    %v709 = vpow.pop %v708
    %v710 = vmul.f32 %v707, 1.442695
    %v711 = vpow.pop %v710
    %v712 = vld [vmem:[#allocation3] sm:$0xff]
    %v713 = vld [vmem:[#allocation3 + $0x8] sm:$0xff]
    %v714 = vmul.f32 %v709, %v712
    %v715 = vmul.f32 %v711, %v713
    %717 = vset.pattern.permute.xlu0 0
    %718 = vperm.xlu0 %717, %v704
    %v719 = vpop.permute.xlu0 %718
    %722 = vset.pattern.permute.xlu0 0
    %723 = vperm.xlu0 %722, %v705
    %v724 = vpop.permute.xlu0 %723
    %v726 = vsub.f32 %v582, %v719
    %v727 = vsub.f32 %v596, %v719
    %v728 = vsub.f32 %v610, %v719
    %v729 = vsub.f32 %v624, %v719
    %v730 = vsub.f32 %v638, %v719
    %v731 = vsub.f32 %v652, %v719
    %v732 = vsub.f32 %v666, %v719
    %v733 = vsub.f32 %v680, %v719
    %v734 = vsub.f32 %v584, %v724
    %v735 = vsub.f32 %v598, %v724
    %v736 = vsub.f32 %v612, %v724
    %v737 = vsub.f32 %v626, %v724
    %v738 = vsub.f32 %v640, %v724
    %v739 = vsub.f32 %v654, %v724
    %v740 = vsub.f32 %v668, %v724
    %v741 = vsub.f32 %v682, %v724
    %v742 = vmul.f32 %v726, 1.442695
    %v743 = vpow.pop %v742
    %v744 = vmul.f32 %v727, 1.442695
    %v745 = vpow.pop %v744
    %v746 = vmul.f32 %v728, 1.442695
    %v747 = vpow.pop %v746
    %v748 = vmul.f32 %v729, 1.442695
    %v749 = vpow.pop %v748
    %v750 = vmul.f32 %v730, 1.442695
    %v751 = vpow.pop %v750
    %v752 = vmul.f32 %v731, 1.442695
    %v753 = vpow.pop %v752
    %v754 = vmul.f32 %v732, 1.442695
    %v755 = vpow.pop %v754
    %v756 = vmul.f32 %v733, 1.442695
    %v757 = vpow.pop %v756
    %v758 = vmul.f32 %v734, 1.442695
    %v759 = vpow.pop %v758
    %v760 = vmul.f32 %v735, 1.442695
    %v761 = vpow.pop %v760
    %v762 = vmul.f32 %v736, 1.442695
    %v763 = vpow.pop %v762
    %v764 = vmul.f32 %v737, 1.442695
    %v765 = vpow.pop %v764
    %v766 = vmul.f32 %v738, 1.442695
    %v767 = vpow.pop %v766
    %v768 = vmul.f32 %v739, 1.442695
    %v769 = vpow.pop %v768
    %v770 = vmul.f32 %v740, 1.442695
    %v771 = vpow.pop %v770
    %v772 = vmul.f32 %v741, 1.442695
    %v773 = vpow.pop %v772
    %v774 = vadd.f32 %v743, %v745
    %v775 = vadd.f32 %v774, %v747
    %v776 = vadd.f32 %v775, %v749
    %v777 = vadd.f32 %v776, %v751
    %v778 = vadd.f32 %v777, %v753
    %v779 = vadd.f32 %v778, %v755
    %v780 = vadd.f32 %v779, %v757
    %781 = vadd.xlane.f32.xlu0 %v780
    %v782 = vpop.xlane.xlu0 %781
    %v783 = vadd.f32 %v759, %v761
    %v784 = vadd.f32 %v783, %v763
    %v785 = vadd.f32 %v784, %v765
    %v786 = vadd.f32 %v785, %v767
    %v787 = vadd.f32 %v786, %v769
    %v788 = vadd.f32 %v787, %v771
    %v789 = vadd.f32 %v788, %v773
    %790 = vadd.xlane.f32.xlu0 %v789
    %v791 = vpop.xlane.xlu0 %790
    %v792 = vadd.f32 %v714, %v782
    %v793 = vadd.f32 %v715, %v791
    %vm794 = vcmask 7168
    %795 = vst.msk [vmem:[#allocation3] sm:$0xff] %vm794, %v792
    %796 = vst.msk [vmem:[#allocation3 + $0x8] sm:$0xff] %vm794, %v793
    %797 = vst.msk [vmem:[#allocation2] sm:$0xff] %vm794, %v704
    %798 = vst.msk [vmem:[#allocation2 + $0x8] sm:$0xff] %vm794, %v705
    // Predicated region
    $region22: #{tpu_custom_call.1} parent=1 // pred_check
      %p799 = pneg %p43
    $region23: #{tpu_custom_call.1} parent=1 // pred_check_branch
      %801 = sbr.rel (%p799) target = $region25
    $region24: #{tpu_custom_call.1} parent=1 // pred_region
      %v802 = vld [vmem:[#allocation2] sm:$0xff]
      %v803 = vld [vmem:[#allocation2 + $0x8] sm:$0xff]
      %v804 = vld [vmem:[#allocation3] sm:$0xff]
      %v805 = vld [vmem:[#allocation3 + $0x8] sm:$0xff]
      %v806 = vlog2.pop %v804
      %v807 = vmul.f32 %v806, 0.6931472
      %v808 = vlog2.pop %v805
      %v809 = vmul.f32 %v808, 0.6931472
      %v810 = vadd.f32 %v802, %v807
      %v811 = vadd.f32 %v803, %v809
      %812 = vst.msk [vmem:[%s2] sm:$0xff] %vm794, %v810
      %813 = vst.msk [vmem:[%s2 + $0x8] sm:$0xff] %vm794, %v811
    $region25: #{tpu_custom_call.1} parent=1 // pred_fallthru
      _
    // Predicated region
    $region26: #{tpu_custom_call.1} parent=1 // pred_check
      _
    $region27: #{tpu_custom_call.1} parent=1 // pred_check_branch
      %815 = sbr.rel (0) target = $region29
    $region28: #{tpu_custom_call.1} parent=1 // pred_region
      _
    $region29: #{tpu_custom_call.1} parent=1 // pred_fallthru
      _
    // Predicated region
    $region30: #{tpu_custom_call.1} parent=1 // pred_check
      _
    $region31: #{tpu_custom_call.1} parent=1 // pred_check_branch
      %817 = sbr.rel (0) target = $region33
    $region32: #{tpu_custom_call.1} parent=1 // pred_region
      _
    $region33: #{tpu_custom_call.1} parent=1 // pred_fallthru
      _
    %818 = vsyncpa [#allocation5], 1
    %819 = vsyncpa [#allocation7], 1

</llo_original>
